<compile_context>
chip_gen: v7x
topology: tpu7x:2x2x1
jax: 0.10.0
libtpu: 0.0.40
codegen_flags: <defaults>
</compile_context>

<pallas_src>
import functools

import jax
import jax.numpy as jnp
from jax.experimental import pallas as pl
from jax.experimental.pallas import tpu as pltpu


def _round_up(a, b):
    return (a + b - 1) // b * b


def _conv_zero_kernel(x_ref, wk_ref, b_ref, o_ref, xs_ref, acc_ref, *,
                      H, Hout, pad, KH, lane_lo, lane_hi, Kb, Wt_cin, n_wt):
    """Direct conv as KH lane-dense matmuls against a block-banded weight.

    x_ref  : (bt, H, W*Cin_p)   unpadded input rows (reused across Wout tiles)
    wk_ref : (KH, Kb, Nt)       banded weight, shared by every Wout tile
    b_ref  : (1, Nt)            scaled bias, tiled across the Wout tile
    o_ref  : (bt, Hout, Nt)
    xs_ref : (bt, Hp_a, Kp)     VMEM scratch: zero-padded activation slab
    acc_ref: (bt*Hout, Nt)      f32 accumulator scratch
    """
    bt, Hp_a, Kp = xs_ref.shape
    Nt = o_ref.shape[-1]

    # (Re)build the padded slab once per batch tile (the x block is identical
    # for every Wout step).  Only the halo rows / lanes are zero-filled; the
    # interior is written exactly once from x_ref (no zero-then-data double
    # store).  Halo values are never overwritten afterwards.
    @pl.when(pl.program_id(1) == 0)
    def _fill():
        zdt = xs_ref.dtype
        if pad > 0:                                      # top H halo rows
            xs_ref[:, :pad, :] = jnp.zeros((bt, pad, Kp), zdt)
        if Hp_a > pad + H:                               # bottom halo + align rows
            xs_ref[:, pad + H:, :] = jnp.zeros((bt, Hp_a - pad - H, Kp), zdt)
        if lane_lo > 0:                                  # left W halo lanes
            xs_ref[:, pad:pad + H, :lane_lo] = jnp.zeros((bt, H, lane_lo), zdt)
        if lane_hi < Kp:                                 # right W halo + lane pad
            xs_ref[:, pad:pad + H, lane_hi:] = jnp.zeros((bt, H, Kp - lane_hi), zdt)
        xs_ref[:, pad:pad + H, lane_lo:lane_hi] = x_ref[...]

    # Input-lane band feeding this Wout tile (block-banded weight => the MXU
    # only contracts over Kb = (Wt+KW-1)*Cin_p lanes, not the full W*Cin).
    if n_wt == 1:
        band = slice(0, Kb)                              # static, full slab
    else:
        band_lo = pl.multiple_of(pl.program_id(1) * Wt_cin, 128)
        band = pl.ds(band_lo, Kb)

    M = bt * Hout
    for kh in range(KH):                                 # static unroll; KH is tiny
        lhs = xs_ref[:, kh:kh + Hout, band].reshape(M, Kb)
        contrib = jnp.dot(lhs, wk_ref[kh], preferred_element_type=jnp.float32)
        if kh == 0:
            acc_ref[...] = contrib
        else:
            acc_ref[...] += contrib

    out = acc_ref[...] + b_ref[...].astype(jnp.float32)  # (1, Nt) broadcast
    o_ref[...] = out.reshape(bt, Hout, Nt).astype(o_ref.dtype)


def conv_zero_forward_nhwc(x_nhwc, weight_hwio, bias, logs, *,
                           padding=1, stride=1, logscale=3.0,
                           compute_dtype=None, batch_tile=None, wout_tile=None):
    """ConvZero forward, NHWC in / NHWC out (no layout transposes needed).

    `padding` / `stride` are the *module ctor* arguments; the reference module
    forwards them positionally into Conv2d's (stride, padding) slots, so the
    effective conv stride is `padding` and the effective conv padding is
    `stride`.  That swap is reproduced here (no-op for padding = stride = 1).

    compute_dtype=jnp.bfloat16 enables the bf16 MXU path with f32 accumulation
    (valid on v5e as well as v6e/v7x: only the matmul operands are bf16).
    """
    eff_stride, eff_pad = padding, stride                # ctor-arg swap (see docstring)
    assert eff_stride == 1, "TODO(synk): generalize kernel to strided convs"

    B, H, W, Cin = x_nhwc.shape
    KH, KW, Cin_w, Cout = weight_hwio.shape
    assert Cin_w == Cin
    out_dtype = x_nhwc.dtype
    Hout = H + 2 * eff_pad - KH + 1
    Wout = W + 2 * eff_pad - KW + 1

    # ---- Wout tiling (block-banded weight) --------------------------------
    if wout_tile is None:
        Wt = 1
        for d in range(1, Wout + 1):                     # largest divisor, Nt <= ~512 lanes
            if Wout % d == 0 and d * Cout <= max(512, Cout):
                Wt = d
    else:
        Wt = int(wout_tile)
        assert Wout % Wt == 0
    n_wt = Wout // Wt
    Nt = Wt * Cout

    # Pad Cin so band starts land on 128-lane boundaries when tiling Wout.
    Cin_p = Cin
    if n_wt > 1:
        while (Wt * Cin_p) % 128 != 0:
            Cin_p += 1
    Wt_cin = Wt * Cin_p
    Wb = Wt + KW - 1                                     # band width in W positions
    Kb = _round_up(Wb * Cin_p, 128)                      # band lanes (matmul K), 128-dense
    Kp = (n_wt - 1) * Wt_cin + Kb                        # scratch lane extent (128-multiple)
    lane_lo = eff_pad * Cin_p                            # x starts after left W halo
    lane_hi = lane_lo + W * Cin_p
    Hp_a = _round_up(H + 2 * eff_pad, 8)                 # sublane-aligned padded height

    # ---- batch tiling: >=2 grid steps (pipelining + v7x megacore), M->MXU --
    if batch_tile is None:
        cap = max(1, B // 2)
        want = max(1, min(cap, max(1, 256 // max(1, Hout))))
        bt = max(d for d in range(1, want + 1) if B % d == 0)
    else:
        bt = int(batch_tile)
        assert B % bt == 0
    n_bt = B // bt

    # ---- one-time parameter prep (plain JAX glue) --------------------------
    # Fold exp(logs*logscale) into weight and bias: (conv+b)*s == conv@(w*s)+b*s.
    scale = jnp.exp(logs.reshape(-1).astype(jnp.float32) * logscale)        # (Cout,)
    w_s = weight_hwio.astype(jnp.float32) * scale[None, None, None, :]
    b_s = bias.astype(jnp.float32) * scale
    if Cin_p != Cin:
        w_s = jnp.pad(w_s, ((0, 0), (0, 0), (0, Cin_p - Cin), (0, 0)))

    # Block-banded weight, identical for every Wout tile:
    #   wk[kh, (jj+kw)*Cin_p + ci, jj*Cout + co] = w_s[kh, kw, ci, co]
    # built with Wt small slice writes (no dense one-hot selector einsum).
    wblk = w_s.reshape(KH, KW * Cin_p, Cout)
    wk = jnp.zeros((KH, Kb, Nt), jnp.float32)
    for jj in range(Wt):
        wk = wk.at[:, jj * Cin_p:jj * Cin_p + KW * Cin_p,
                   jj * Cout:(jj + 1) * Cout].set(wblk)
    b_full = jnp.tile(b_s, Wt).reshape(1, Nt)

    # Lane-dense activation layout: NHWC -> (B, H, W*Cin_p) is a free bitcast
    # reshape; the Cin zero-pad (one fused pass) only happens when the Wout
    # tiling needs 128-aligned band starts.
    if Cin_p != Cin:
        x_nhwc = jnp.pad(x_nhwc, ((0, 0), (0, 0), (0, 0), (0, Cin_p - Cin)))
    x2 = x_nhwc.reshape(B, H, W * Cin_p)

    cdt = jnp.dtype(compute_dtype) if compute_dtype is not None else x2.dtype
    x2 = x2.astype(cdt)
    wk = wk.astype(cdt)

    # ---- explicit VMEM budget ----------------------------------------------
    isz = jnp.dtype(cdt).itemsize
    osz = jnp.dtype(out_dtype).itemsize
    vmem_need = (2 * bt * H * W * Cin_p * isz            # x block (double buffered)
                 + 2 * KH * Kb * Nt * isz                # banded weight
                 + 2 * Nt * 4                            # bias
                 + 2 * bt * Hout * Nt * osz              # output block
                 + bt * Hp_a * Kp * isz                  # xs scratch
                 + bt * Hout * Nt * 4)                   # f32 accumulator
    vmem_limit = int(max(32 * 2**20, int(1.5 * vmem_need)))
    # TODO(synk): for channel-heavy Glow configs with huge H*W*Cin rows, add H
    # tiling (and cap bt from the per-generation VMEM budget, 64 MiB on v7x).

    kernel = functools.partial(
        _conv_zero_kernel, H=H, Hout=Hout, pad=eff_pad, KH=KH,
        lane_lo=lane_lo, lane_hi=lane_hi, Kb=Kb, Wt_cin=Wt_cin, n_wt=n_wt)

    out2 = pl.pallas_call(
        kernel,
        out_shape=jax.ShapeDtypeStruct((B, Hout, Wout * Cout), out_dtype),
        grid_spec=pltpu.PrefetchScalarGridSpec(
            num_scalar_prefetch=0,
            grid=(n_bt, n_wt),
            in_specs=[
                # activation: one block per batch tile, reused across Wout tiles
                pl.BlockSpec((bt, H, W * Cin_p), lambda b, w: (b, 0, 0)),
                # grid-invariant banded weight / bias (small after banding).
                # TODO(synk): single-buffer these via pipeline_mode=pl.Buffered(1)
                # once that is uniformly supported for constant inputs.
                pl.BlockSpec((KH, Kb, Nt), lambda b, w: (0, 0, 0)),
                pl.BlockSpec((1, Nt), lambda b, w: (0, 0)),
            ],
            out_specs=pl.BlockSpec((bt, Hout, Nt), lambda b, w: (b, 0, w)),
            scratch_shapes=[
                pltpu.VMEM((bt, Hp_a, Kp), cdt),            # padded activation slab
                pltpu.VMEM((bt * Hout, Nt), jnp.float32),   # f32 accumulator
            ],
        ),
        compiler_params=pltpu.CompilerParams(
            dimension_semantics=("parallel", "arbitrary"),
            vmem_limit_bytes=vmem_limit),
    )(x2, wk, b_full)

    return out2.reshape(B, Hout, Wout, Cout)


def conv_zero_forward(x_nchw, weight_hwio, bias, logs, **kwargs):
    """PyTorch-parity adapter (NCHW in / NCHW out).

    The two transposes are pure layout glue costing a full HBM round trip
    each; an NHWC-native model should call conv_zero_forward_nhwc directly.
    """
    x_nhwc = jnp.transpose(x_nchw, (0, 2, 3, 1))
    y = conv_zero_forward_nhwc(x_nhwc, weight_hwio, bias, logs, **kwargs)
    return jnp.transpose(y, (0, 3, 1, 2))


if __name__ == "__main__":
    key = jax.random.PRNGKey(0)
    kx, kw_, kb, kl, kx2 = jax.random.split(key, 5)

    def reference(x_nchw, w_hwio, b, logs, pad, logscale):
        x_nhwc = jnp.transpose(x_nchw, (0, 2, 3, 1))
        y = jax.lax.conv_general_dilated(
            x_nhwc, w_hwio, window_strides=(1, 1),
            padding=[(pad, pad), (pad, pad)],
            dimension_numbers=("NHWC", "HWIO", "NHWC"))
        y = (y + b.reshape(1, 1, 1, -1)) * jnp.exp(
            logs.reshape(1, 1, 1, -1) * logscale)
        return jnp.transpose(y, (0, 3, 1, 2))

    # ---- primary config (small shapes implied by the module) ----
    B, Cin, Cout, H, W, K = 2, 4, 8, 16, 16, 3
    x = jax.random.normal(kx, (B, Cin, H, W), dtype=jnp.float32)
    # The real module zero-inits weight/bias/logs (output would be all zeros);
    # use small deterministic nonzero params so the compute path is exercised.
    w_hwio = 0.1 * jax.random.normal(kw_, (K, K, Cin, Cout), jnp.float32)
    b = 0.1 * jax.random.normal(kb, (Cout,), jnp.float32)
    logs = 0.1 * jax.random.normal(kl, (Cout, 1, 1), jnp.float32)

    out = jax.block_until_ready(
        conv_zero_forward(x, w_hwio, b, logs, padding=1, stride=1, logscale=3.0))
    ref = reference(x, w_hwio, b, logs, 1, 3.0)
    assert out.shape == (B, Cout, H, W)
    assert jnp.allclose(out, ref, atol=1e-4, rtol=1e-4)

    # ---- bf16 MXU fast path (valid on v5e/v6e/v7x; f32 accumulation) ----
    out_bf16 = jax.block_until_ready(
        conv_zero_forward(x, w_hwio, b, logs, padding=1, stride=1, logscale=3.0,
                          compute_dtype=jnp.bfloat16))
    assert jnp.allclose(out_bf16, ref, atol=1e-1, rtol=1e-1)

    # ---- wider image exercising the block-banded Wout tiling (2 tiles) ----
    W2 = 32
    x_wide = jax.random.normal(kx2, (B, Cin, H, W2), dtype=jnp.float32)
    out_wide = jax.block_until_ready(
        conv_zero_forward(x_wide, w_hwio, b, logs, padding=1, stride=1,
                          logscale=3.0, wout_tile=16))
    ref_wide = reference(x_wide, w_hwio, b, logs, 1, 3.0)
    assert out_wide.shape == (B, Cout, H, W2)
    assert jnp.allclose(out_wide, ref_wide, atol=1e-4, rtol=1e-4)

    print("KERNEL_OK")
</pallas_src>

<mosaic_0001>
module attributes {stable_mosaic.version = 11 : i64} {
  func.func @_conv_zero_kernel(%arg0: i32, %arg1: i32, %arg2: memref<1x16x64xf32, #tpu.memory_space<vmem>>, %arg3: memref<3x128x128xf32, #tpu.memory_space<vmem>>, %arg4: memref<1x128xf32, #tpu.memory_space<vmem>>, %arg5: memref<1x16x128xf32, #tpu.memory_space<vmem>>, %arg6: memref<1x24x128xf32, #tpu.memory_space<vmem>>, %arg7: memref<16x128xf32, #tpu.memory_space<vmem>>) attributes {dimension_semantics = [#tpu.dimension_semantics<parallel>, #tpu.dimension_semantics<arbitrary>], iteration_bounds = array<i64: 2, 1>, scalar_prefetch = 0 : i64, scratch_operands = 2 : i64, tpu.core_type = #tpu.core_type<tc>, window_params = [{transform_indices = @transform_0, window_bounds = array<i64: 1, 16, 64>}, {pipeline_mode = #tpu.pipeline_mode<synchronous>, transform_indices = @transform_1, window_bounds = array<i64: 3, 128, 128>}, {pipeline_mode = #tpu.pipeline_mode<synchronous>, transform_indices = @transform_2, window_bounds = array<i64: 1, 128>}, {transform_indices = @transform_3, window_bounds = array<i64: 1, 16, 128>}]} {
    %c0_i32 = arith.constant 0 : i32
    %0 = arith.cmpi eq, %arg1, %c0_i32 : i32
    %1 = arith.extui %0 : i1 to i32
    %c0_i32_0 = arith.constant 0 : i32
    %2 = arith.cmpi ne, %1, %c0_i32_0 : i32
    scf.if %2 {
      %cst_35 = arith.constant 0.000000e+00 : f32
      %31 = vector.broadcast %cst_35 : f32 to vector<1x1x128xf32>
      %c0_36 = arith.constant 0 : index
      %c0_37 = arith.constant 0 : index
      %c0_38 = arith.constant 0 : index
      %32 = vector.load %arg6[%c0_36, %c0_37, %c0_38] : memref<1x24x128xf32, #tpu.memory_space<vmem>>, vector<1x1x128xf32>
      tpu.vector_store %arg6[%c0_36, %c0_37, %c0_38], %31 {strides = array<i32>} : memref<1x24x128xf32, #tpu.memory_space<vmem>>, vector<1x1x128xf32>,
      %cst_39 = arith.constant 0.000000e+00 : f32
      %33 = vector.broadcast %cst_39 : f32 to vector<1x7x128xf32>
      %c0_40 = arith.constant 0 : index
      %c17 = arith.constant 17 : index
      %c0_41 = arith.constant 0 : index
      %34 = vector.load %arg6[%c0_40, %c17, %c0_41] : memref<1x24x128xf32, #tpu.memory_space<vmem>>, vector<1x7x128xf32>
      tpu.vector_store %arg6[%c0_40, %c17, %c0_41], %33 {strides = array<i32>} : memref<1x24x128xf32, #tpu.memory_space<vmem>>, vector<1x7x128xf32>,
      %cst_42 = arith.constant 0.000000e+00 : f32
      %35 = vector.broadcast %cst_42 : f32 to vector<1x16x4xf32>
      %c0_43 = arith.constant 0 : index
      %c1_44 = arith.constant 1 : index
      %c0_45 = arith.constant 0 : index
      %36 = vector.load %arg6[%c0_43, %c1_44, %c0_45] : memref<1x24x128xf32, #tpu.memory_space<vmem>>, vector<1x16x4xf32>
      tpu.vector_store %arg6[%c0_43, %c1_44, %c0_45], %35 {strides = array<i32>} : memref<1x24x128xf32, #tpu.memory_space<vmem>>, vector<1x16x4xf32>,
      %cst_46 = arith.constant 0.000000e+00 : f32
      %37 = vector.broadcast %cst_46 : f32 to vector<1x16x60xf32>
      %c0_47 = arith.constant 0 : index
      %c1_48 = arith.constant 1 : index
      %c68 = arith.constant 68 : index
      %38 = vector.load %arg6[%c0_47, %c1_48, %c68] : memref<1x24x128xf32, #tpu.memory_space<vmem>>, vector<1x16x60xf32>
      tpu.vector_store %arg6[%c0_47, %c1_48, %c68], %37 {strides = array<i32>} : memref<1x24x128xf32, #tpu.memory_space<vmem>>, vector<1x16x60xf32>,
      %c0_49 = arith.constant 0 : index
      %c0_50 = arith.constant 0 : index
      %c0_51 = arith.constant 0 : index
      %39 = vector.load %arg2[%c0_49, %c0_50, %c0_51] : memref<1x16x64xf32, #tpu.memory_space<vmem>>, vector<1x16x64xf32>
      %c0_52 = arith.constant 0 : index
      %c1_53 = arith.constant 1 : index
      %c4 = arith.constant 4 : index
      %40 = vector.load %arg6[%c0_52, %c1_53, %c4] : memref<1x24x128xf32, #tpu.memory_space<vmem>>, vector<1x16x64xf32>
      tpu.vector_store %arg6[%c0_52, %c1_53, %c4], %39 {strides = array<i32>} : memref<1x24x128xf32, #tpu.memory_space<vmem>>, vector<1x16x64xf32>,
    } else {
    }
    %c0 = arith.constant 0 : index
    %c0_1 = arith.constant 0 : index
    %c0_2 = arith.constant 0 : index
    %3 = vector.load %arg6[%c0, %c0_1, %c0_2] : memref<1x24x128xf32, #tpu.memory_space<vmem>>, vector<1x16x128xf32>
    %4 = vector.shape_cast %3 : vector<1x16x128xf32> to vector<16x128xf32>
    %c0_3 = arith.constant 0 : index
    %c0_4 = arith.constant 0 : index
    %c0_5 = arith.constant 0 : index
    %5 = vector.load %arg3[%c0_3, %c0_4, %c0_5] : memref<3x128x128xf32, #tpu.memory_space<vmem>>, vector<1x128x128xf32>
    %6 = vector.shape_cast %5 : vector<1x128x128xf32> to vector<128x128xf32>
    %cst = arith.constant dense<0.000000e+00> : vector<16x128xf32>
    %7 = tpu.matmul %4, %6, %cst {dimension_numbers = #tpu.dot_dimension_numbers<[1], [0], [0], [1], [0, 0, 1, 1], [], []>} : vector<16x128xf32>, vector<128x128xf32>, vector<16x128xf32> -> vector<16x128xf32>
    %c0_6 = arith.constant 0 : index
    %c0_7 = arith.constant 0 : index
    %8 = vector.load %arg7[%c0_6, %c0_7] : memref<16x128xf32, #tpu.memory_space<vmem>>, vector<16x128xf32>
    tpu.vector_store %arg7[%c0_6, %c0_7], %7 {strides = array<i32>} : memref<16x128xf32, #tpu.memory_space<vmem>>, vector<16x128xf32>,
    %c0_8 = arith.constant 0 : index
    %c1 = arith.constant 1 : index
    %c0_9 = arith.constant 0 : index
    %9 = vector.load %arg6[%c0_8, %c1, %c0_9] : memref<1x24x128xf32, #tpu.memory_space<vmem>>, vector<1x16x128xf32>
    %10 = vector.shape_cast %9 : vector<1x16x128xf32> to vector<16x128xf32>
    %c1_10 = arith.constant 1 : index
    %c0_11 = arith.constant 0 : index
    %c0_12 = arith.constant 0 : index
    %11 = vector.load %arg3[%c1_10, %c0_11, %c0_12] : memref<3x128x128xf32, #tpu.memory_space<vmem>>, vector<1x128x128xf32>
    %12 = vector.shape_cast %11 : vector<1x128x128xf32> to vector<128x128xf32>
    %cst_13 = arith.constant dense<0.000000e+00> : vector<16x128xf32>
    %13 = tpu.matmul %10, %12, %cst_13 {dimension_numbers = #tpu.dot_dimension_numbers<[1], [0], [0], [1], [0, 0, 1, 1], [], []>} : vector<16x128xf32>, vector<128x128xf32>, vector<16x128xf32> -> vector<16x128xf32>
    %c0_14 = arith.constant 0 : index
    %c0_15 = arith.constant 0 : index
    %14 = vector.load %arg7[%c0_14, %c0_15] : memref<16x128xf32, #tpu.memory_space<vmem>>, vector<16x128xf32>
    %15 = arith.addf %14, %13 : vector<16x128xf32>
    %c0_16 = arith.constant 0 : index
    %c0_17 = arith.constant 0 : index
    %16 = vector.load %arg7[%c0_16, %c0_17] : memref<16x128xf32, #tpu.memory_space<vmem>>, vector<16x128xf32>
    tpu.vector_store %arg7[%c0_16, %c0_17], %15 {strides = array<i32>} : memref<16x128xf32, #tpu.memory_space<vmem>>, vector<16x128xf32>,
    %c0_18 = arith.constant 0 : index
    %c2 = arith.constant 2 : index
    %c0_19 = arith.constant 0 : index
    %17 = vector.load %arg6[%c0_18, %c2, %c0_19] : memref<1x24x128xf32, #tpu.memory_space<vmem>>, vector<1x16x128xf32>
    %18 = vector.shape_cast %17 : vector<1x16x128xf32> to vector<16x128xf32>
    %c2_20 = arith.constant 2 : index
    %c0_21 = arith.constant 0 : index
    %c0_22 = arith.constant 0 : index
    %19 = vector.load %arg3[%c2_20, %c0_21, %c0_22] : memref<3x128x128xf32, #tpu.memory_space<vmem>>, vector<1x128x128xf32>
    %20 = vector.shape_cast %19 : vector<1x128x128xf32> to vector<128x128xf32>
    %cst_23 = arith.constant dense<0.000000e+00> : vector<16x128xf32>
    %21 = tpu.matmul %18, %20, %cst_23 {dimension_numbers = #tpu.dot_dimension_numbers<[1], [0], [0], [1], [0, 0, 1, 1], [], []>} : vector<16x128xf32>, vector<128x128xf32>, vector<16x128xf32> -> vector<16x128xf32>
    %c0_24 = arith.constant 0 : index
    %c0_25 = arith.constant 0 : index
    %22 = vector.load %arg7[%c0_24, %c0_25] : memref<16x128xf32, #tpu.memory_space<vmem>>, vector<16x128xf32>
    %23 = arith.addf %22, %21 : vector<16x128xf32>
    %c0_26 = arith.constant 0 : index
    %c0_27 = arith.constant 0 : index
    %24 = vector.load %arg7[%c0_26, %c0_27] : memref<16x128xf32, #tpu.memory_space<vmem>>, vector<16x128xf32>
    tpu.vector_store %arg7[%c0_26, %c0_27], %23 {strides = array<i32>} : memref<16x128xf32, #tpu.memory_space<vmem>>, vector<16x128xf32>,
    %c0_28 = arith.constant 0 : index
    %c0_29 = arith.constant 0 : index
    %25 = vector.load %arg7[%c0_28, %c0_29] : memref<16x128xf32, #tpu.memory_space<vmem>>, vector<16x128xf32>
    %c0_30 = arith.constant 0 : index
    %c0_31 = arith.constant 0 : index
    %26 = vector.load %arg4[%c0_30, %c0_31] : memref<1x128xf32, #tpu.memory_space<vmem>>, vector<1x128xf32>
    %27 = vector.broadcast %26 : vector<1x128xf32> to vector<16x128xf32>
    %28 = arith.addf %25, %27 : vector<16x128xf32>
    %29 = vector.shape_cast %28 : vector<16x128xf32> to vector<1x16x128xf32>
    %c0_32 = arith.constant 0 : index
    %c0_33 = arith.constant 0 : index
    %c0_34 = arith.constant 0 : index
    %30 = vector.load %arg5[%c0_32, %c0_33, %c0_34] : memref<1x16x128xf32, #tpu.memory_space<vmem>>, vector<1x16x128xf32>
    tpu.vector_store %arg5[%c0_32, %c0_33, %c0_34], %29 {strides = array<i32>} : memref<1x16x128xf32, #tpu.memory_space<vmem>>, vector<1x16x128xf32>,
    return
  }
  func.func @transform_0(%arg0: i32, %arg1: i32) -> (i32, i32, i32) {
    %c0_i32 = arith.constant 0 : i32
    %c0_i32_0 = arith.constant 0 : i32
    %c0_i32_1 = arith.constant 0 : i32
    return %arg0, %c0_i32, %c0_i32_0 : i32, i32, i32
  }
  func.func @transform_1(%arg0: i32, %arg1: i32) -> (i32, i32, i32) {
    %c0_i32 = arith.constant 0 : i32
    %c0_i32_0 = arith.constant 0 : i32
    %c0_i32_1 = arith.constant 0 : i32
    %c0_i32_2 = arith.constant 0 : i32
    return %c0_i32, %c0_i32_0, %c0_i32_1 : i32, i32, i32
  }
  func.func @transform_2(%arg0: i32, %arg1: i32) -> (i32, i32) {
    %c0_i32 = arith.constant 0 : i32
    %c0_i32_0 = arith.constant 0 : i32
    %c0_i32_1 = arith.constant 0 : i32
    return %c0_i32, %c0_i32_0 : i32, i32
  }
  func.func @transform_3(%arg0: i32, %arg1: i32) -> (i32, i32, i32) {
    %c0_i32 = arith.constant 0 : i32
    %c0_i32_0 = arith.constant 0 : i32
    return %arg0, %c0_i32, %arg1 : i32, i32, i32
  }
}

</mosaic_0001>

<llo_original>
// kernel: tpu_custom_call.1
$region0: #{tpu_custom_call.1}
  #allocation0 [shape = 'u32[]', space=smem, size = 0x4, offset = 0x4, fixed_abs, tag = 'smem constant byte address 0x4 - core index']
  #allocation1 [shape = 'u32[144,128]{1,0:T(1,128)}', space=vmem, size = 0x12000, scoped, tag = 'internal scratch']
  #allocation2 [shape = 'f32[1,24,128]{2,1,0:T(8,128)}', space=vmem, size = 0x3000, scoped, tag = 'scratch operand']
  #allocation3 [shape = 'f32[16,128]{1,0:T(8,128)}', space=vmem, size = 0x2000, scoped, tag = 'scratch operand']
  %s0 = inlined_call_operand.hbm [shape: f32[2,16,64], index: 0, kind: input, shape index: {}]
  %s1 = inlined_call_operand.hbm [shape: f32[3,128,128], index: 1, kind: input, shape index: {}]
  %s2 = inlined_call_operand.vmem [shape: f32[1,128], index: 2, kind: input, shape index: {}]
  %s3 = inlined_call_operand.hbm [shape: f32[2,16,128], index: 3, kind: output, shape index: {}]
  %s4 = sld [smem:[#allocation0]]
  $region57: #{tpu_custom_call.1} parent=0
    _
  %s6 = ssub.s32 1, %s4
  %s7 = scalar_select 0, %s6, %s4
  $region1: #{tpu_custom_call.1} parent=0
    #allocation4 [shape = 'u8[16384]{0}', space=vmem, size = 0x4000, scoped, tag = 'input window, operand 0']
    #allocation5 [shape = 's32[2]{0}', space=sflag, size = 0x8, scoped, tag = 'scoped memory for tpu_custom_call.1']
    #allocation6 [shape = 's32[2]{0}', space=sflag, size = 0x8, scoped, tag = 'scoped memory for tpu_custom_call.1']
    #allocation7 [shape = 'u8[196608]{0}', space=vmem, size = 0x30000, scoped, tag = 'input window, operand 1, single buffered']
    #allocation8 [shape = 's32[1]{0}', space=sflag, size = 0x4, scoped, tag = 'scoped memory for tpu_custom_call.1']
    #allocation9 [shape = 'u8[16384]{0}', space=vmem, size = 0x4000, scoped, tag = 'output window, operand 0']
    %8 = vsyncpa [#allocation5], 0
    %s9 = scalar_lea.sflag [#allocation5], 1
    %10 = vsyncpa %s9, 0
    %11 = vsyncpa [#allocation8], 0
    %12 = vsyncpa [#allocation6], 0
    %s13 = scalar_lea.sflag [#allocation6], 1
    %14 = vsyncpa %s13, 0
    loop: start=0, step=1, limit=4
    $region2: #{tpu_custom_call.1} parent=1 // loop_pre_header
      _
    $region3: #{tpu_custom_call.1} parent=1 // loop_header
      %s16 = sphi 0, %s20
      %p17 = scmp.ge.s32.totalorder %s16, 4
      %s23 = sphi 0, %s35
      %s24 = sphi 0, %s31
      %s25 = sphi 0, %s23
      %s26 = sphi 0, %s24
      %s27 = sphi 0, %s25
      %s28 = sphi 0, %s26
      %s38 = sphi 0, %s40
      %s41 = sphi 0, %s38
      %s42 = sphi 0, %s41
      %s58 = sphi 0, %s42
      %s62 = sphi 0, %s62
      %s64 = sphi 0, %s62
      %s65 = sphi 0, %s64
      %s79 = sphi 0, %s65
      %s83 = sphi 0, %s83
      %s85 = sphi 0, %s83
      %s86 = sphi 0, %s85
      %s100 = sphi 0, %s86
      %s108 = sphi 0, %s110
      %s111 = sphi 0, %s108
      %s112 = sphi 0, %s111
      %s128 = sphi 0, %s112
    $region4: #{tpu_custom_call.1} parent=1 // loop_header_branch
      %19 = sbr.rel (%p17) target = $region8
    $region5: #{tpu_custom_call.1} parent=1 // loop_body
      %s21 = ssub.s32 %s16, 1
      %s22 = ssub.s32 %s16, 2
      %s29 = sadd.s32 1, %s24
      %p30 = scmp.ge.s32.totalorder %s29, 1
      %s31 = scalar_select %p30, 0, %s29
      %s32 = sadd.s32 1, %s23
      %s33 = scalar_select %p30, %s32, %s23
      %p34 = scmp.ge.s32.totalorder %s33, 2
      %s35 = scalar_select %p34, 0, %s33
      %s36 = ssub.s32 %s23, %s35
      %p37 = scmp.eq.s32.totalorder %s36, 0
      %s39 = sadd.s32 %s38, 1
      %s40 = scalar_select %p37, %s38, %s39
      %p43 = pneg %p37
      %p44 = scmp.eq.s32.totalorder %s16, 1
      %p45 = por %p43, %p44
      %p46 = scmp.ne.s32.totalorder %s38, %s41
      %p47 = scmp.eq.s32.totalorder %s16, 0
      %p48 = por %p46, %p47
      %p49 = scmp.ne.s32.totalorder %s38, %s41
      %p50 = scmp.eq.s32.totalorder %s21, 1
      %p51 = por %p49, %p50
      %p52 = scmp.ne.s32.totalorder %s41, %s42
      %p53 = scmp.eq.s32.totalorder %s21, 0
      %p54 = por %p52, %p53
      %p55 = scmp.ne.s32.totalorder %s41, %s42
      %p56 = scmp.eq.s32.totalorder %s22, 1
      %p57 = por %p55, %p56
      %p59 = scmp.ne.s32.totalorder %s42, %s58
      %p60 = scmp.eq.s32.totalorder %s22, 0
      %p61 = por %p59, %p60
      %s63 = sadd.s32 %s62, 1
      %p66 = scmp.eq.s32.totalorder %s16, 1
      %p67 = scmp.ne.s32.totalorder %s62, %s64
      %p68 = scmp.eq.s32.totalorder %s16, 0
      %p69 = por %p67, %p68
      %p70 = scmp.ne.s32.totalorder %s62, %s64
      %p71 = scmp.eq.s32.totalorder %s21, 1
      %p72 = por %p70, %p71
      %p73 = scmp.ne.s32.totalorder %s64, %s65
      %p74 = scmp.eq.s32.totalorder %s21, 0
      %p75 = por %p73, %p74
      %p76 = scmp.ne.s32.totalorder %s64, %s65
      %p77 = scmp.eq.s32.totalorder %s22, 1
      %p78 = por %p76, %p77
      %p80 = scmp.ne.s32.totalorder %s65, %s79
      %p81 = scmp.eq.s32.totalorder %s22, 0
      %p82 = por %p80, %p81
      %s84 = sadd.s32 %s83, 1
      %p87 = scmp.eq.s32.totalorder %s16, 1
      %p88 = scmp.ne.s32.totalorder %s83, %s85
      %p89 = scmp.eq.s32.totalorder %s16, 0
      %p90 = por %p88, %p89
      %p91 = scmp.ne.s32.totalorder %s83, %s85
      %p92 = scmp.eq.s32.totalorder %s21, 1
      %p93 = por %p91, %p92
      %p94 = scmp.ne.s32.totalorder %s85, %s86
      %p95 = scmp.eq.s32.totalorder %s21, 0
      %p96 = por %p94, %p95
      %p97 = scmp.ne.s32.totalorder %s85, %s86
      %p98 = scmp.eq.s32.totalorder %s22, 1
      %p99 = por %p97, %p98
      %p101 = scmp.ne.s32.totalorder %s86, %s100
      %p102 = scmp.eq.s32.totalorder %s22, 0
      %p103 = por %p101, %p102
      %s104 = ssub.s32 %s23, %s35
      %s105 = ssub.s32 %s24, %s31
      %s106 = sor.u32 %s104, %s105
      %p107 = scmp.eq.s32.totalorder %s106, 0
      %s109 = sadd.s32 %s108, 1
      %s110 = scalar_select %p107, %s108, %s109
      %p113 = pneg %p107
      %p114 = scmp.eq.s32.totalorder %s16, 1
      %p115 = por %p113, %p114
      %p116 = scmp.ne.s32.totalorder %s108, %s111
      %p117 = scmp.eq.s32.totalorder %s16, 0
      %p118 = por %p116, %p117
      %p119 = scmp.ne.s32.totalorder %s108, %s111
      %p120 = scmp.eq.s32.totalorder %s21, 1
      %p121 = por %p119, %p120
      %p122 = scmp.ne.s32.totalorder %s111, %s112
      %p123 = scmp.eq.s32.totalorder %s21, 0
      %p124 = por %p122, %p123
      %p125 = scmp.ne.s32.totalorder %s111, %s112
      %p126 = scmp.eq.s32.totalorder %s22, 1
      %p127 = por %p125, %p126
      %p129 = scmp.ne.s32.totalorder %s112, %s128
      %p130 = scmp.eq.s32.totalorder %s22, 0
      %p131 = por %p129, %p130
      %p132 = scmp.le.s32.totalorder 1, %s16
      %p133 = scmp.lt.s32.totalorder %s16, 3
      %p134 = pnand %p132, %p133
      %p135 = pneg %p134
      // Predicated region
      $region9: #{tpu_custom_call.1} parent=5 // pred_check
        _
      $region10: #{tpu_custom_call.1} parent=5 // pred_check_branch
        %137 = sbr.rel (%p134) target = $region12
      $region11: #{tpu_custom_call.1} parent=5 // pred_region
        %s138 = ssub.s32 %s16, 1
        // Predicated region
        $region13: #{tpu_custom_call.1} parent=11 // pred_check
          %p139 = pneg %p75
        $region14: #{tpu_custom_call.1} parent=11 // pred_check_branch
          %141 = sbr.rel (%p139) target = $region16
        $region15: #{tpu_custom_call.1} parent=11 // pred_region
          %s143 = ssub.s32 6144, 6144
          %144 = vsyncadd [#allocation8], %s143
          %s145 = sshll.u32 [#allocation7], 4
          %s146 = int_to_ptr.vmem [resolvable:$true] %s145
          %151 = dma.hbm_to_vmem [thread:$0]  %s1, 6144, %s146, [#allocation8], 128, 128, 8
        $region16: #{tpu_custom_call.1} parent=11 // pred_fallthru
          _
        // Predicated region
        $region17: #{tpu_custom_call.1} parent=11 // pred_check
          %p152 = pneg %p96
        $region18: #{tpu_custom_call.1} parent=11 // pred_check_branch
          %154 = sbr.rel (%p152) target = $region20
        $region19: #{tpu_custom_call.1} parent=11 // pred_region
          _
        $region20: #{tpu_custom_call.1} parent=11 // pred_fallthru
          _
      $region12: #{tpu_custom_call.1} parent=5 // pred_fallthru
        _
      %p155 = scmp.lt.s32.totalorder %s16, 2
      // Predicated region
      $region21: #{tpu_custom_call.1} parent=5 // pred_check
        %p156 = pneg %p155
      $region22: #{tpu_custom_call.1} parent=5 // pred_check_branch
        %158 = sbr.rel (%p156) target = $region24
      $region23: #{tpu_custom_call.1} parent=5 // pred_region
        // Predicated region
        $region25: #{tpu_custom_call.1} parent=23 // pred_check
          %p159 = pneg %p48
        $region26: #{tpu_custom_call.1} parent=23 // pred_check_branch
          %161 = sbr.rel (%p159) target = $region28
        $region27: #{tpu_custom_call.1} parent=23 // pred_region
          %s162 = sand.u32 %s38, 1
          %s163 = scalar_lea.sflag [#allocation5], %s162
          %s164 = sand.u32 %s38, 1
          %s165 = smul.addr %s164, 16
          %s166 = scalar_lea.vmem [#allocation4], %s165
          %s168 = ssub.s32 256, 256
          %169 = vsyncadd %s163, %s168
          %s170 = smul.addr %s23, 2
          %s171 = smul.addr %s170, 128
          %s172 = scalar_lea.hbm %s0, %s171
          %s173 = sshll.u32 %s166, 4
          %s174 = int_to_ptr.vmem [resolvable:$true] %s173
          %179 = dma.hbm_to_vmem [thread:$0]  %s172, 256, %s174, %s163, 128, 128, 8
        $region28: #{tpu_custom_call.1} parent=23 // pred_fallthru
          _
      $region24: #{tpu_custom_call.1} parent=5 // pred_fallthru
        _
      %p180 = scmp.le.s32.totalorder 1, %s16
      %p181 = scmp.lt.s32.totalorder %s16, 3
      %p182 = pnand %p180, %p181
      %p183 = pneg %p182
      // Predicated region
      $region29: #{tpu_custom_call.1} parent=5 // pred_check
        _
      $region30: #{tpu_custom_call.1} parent=5 // pred_check_branch
        %185 = sbr.rel (%p182) target = $region32
      $region31: #{tpu_custom_call.1} parent=5 // pred_region
        %s186 = ssub.s32 %s16, 1
        %s187 = sand.u32 %s41, 1
        %s188 = scalar_lea.sflag [#allocation5], %s187
        %s189 = sand.u32 %s41, 1
        %s190 = smul.addr %s189, 16
        %s191 = scalar_lea.vmem [#allocation4], %s190
        // Predicated region
        $region33: #{tpu_custom_call.1} parent=31 // pred_check
          %p192 = pneg %p54
        $region34: #{tpu_custom_call.1} parent=31 // pred_check_branch
          %194 = sbr.rel (%p192) target = $region36
        $region35: #{tpu_custom_call.1} parent=31 // pred_region
          %195 = dma.done %s188, 256
        $region36: #{tpu_custom_call.1} parent=31 // pred_fallthru
          _
        // Predicated region
        $region37: #{tpu_custom_call.1} parent=31 // pred_check
          %p196 = pneg %p75
        $region38: #{tpu_custom_call.1} parent=31 // pred_check_branch
          %198 = sbr.rel (%p196) target = $region40
        $region39: #{tpu_custom_call.1} parent=31 // pred_region
          %199 = dma.done [#allocation8], 6144
        $region40: #{tpu_custom_call.1} parent=31 // pred_fallthru
          _
        %s200 = sand.u32 %s41, 1
        %s201 = scalar_lea.sflag [#allocation5], %s200
        %s202 = sand.u32 %s41, 1
        %s203 = smul.addr %s202, 16
        %s204 = scalar_lea.vmem [#allocation4], %s203
        %p205 = pneg %p54
        %p206 = pneg %p51
        %p207 = pneg %p75
        %p208 = pneg %p72
        %p209 = pneg %p96
        %p210 = pneg %p93
        %p211 = pneg %p124
        %p212 = pneg %p121
        %s213 = sand.u32 %s111, 1
        %s214 = scalar_lea.sflag [#allocation6], %s213
        %s215 = sand.u32 %s111, 1
        %s216 = smul.addr %s215, 16
        %s217 = scalar_lea.vmem [#allocation9], %s216
        %p218 = scmp.eq.s32.totalorder %s26, 0
        // Predicated region
        $region41: #{tpu_custom_call.1} parent=31 // pred_check
          %p219 = pneg %p218
        $region42: #{tpu_custom_call.1} parent=31 // pred_check_branch
          %221 = sbr.rel (%p219) target = $region44
        $region43: #{tpu_custom_call.1} parent=31 // pred_region
          %222 = vst [vmem:[#allocation2] sm:$0x1] 0.0
          %223 = vst [vmem:[#allocation2 + $0x11] sm:$0x7f] 0.0
          %vm224 = vcmask 31744
          %225 = vst.msk [vmem:[#allocation2 + $0x1] sm:$0xff] %vm224, 0.0
          %226 = vst.msk [vmem:[#allocation2 + $0x9] sm:$0xff] %vm224, 0.0
          %vm227 = vcmask 1048096
          %228 = vst.msk [vmem:[#allocation2 + $0x1] sm:$0xff] %vm227, 0.0
          %229 = vst.msk [vmem:[#allocation2 + $0x9] sm:$0xff] %vm227, 0.0
          %v230 = vld [vmem:[%s191] sm:$0xff]
          %v231 = vld [vmem:[%s191 + $0x8] sm:$0xff]
          %234 = vrot.lane.b32.xlu0 %v230, 4
          %v235 = vpop.permute.xlu0 %234
          %236 = vrot.lane.b32.xlu0 %v231, 4
          %v237 = vpop.permute.xlu0 %236
          %vm240 = vcmask 556064
          %241 = vst.msk [vmem:[#allocation2 + $0x1] sm:$0xff] %vm240, %v235
          %242 = vst.msk [vmem:[#allocation2 + $0x9] sm:$0xff] %vm240, %v237
        $region44: #{tpu_custom_call.1} parent=31 // pred_fallthru
          _
        %v243 = vld [vmem:[#allocation2] sm:$0xff]
        %v244 = vld [vmem:[#allocation2 + $0x8] sm:$0xff]
        %v245 = vld [vmem:[#allocation7] sm:$0xff]
        %v246 = vld [vmem:[#allocation7 + $0x8] sm:$0xff]
        %v247 = vld [vmem:[#allocation7 + $0x10] sm:$0xff]
        %v248 = vld [vmem:[#allocation7 + $0x18] sm:$0xff]
        %v249 = vld [vmem:[#allocation7 + $0x20] sm:$0xff]
        %v250 = vld [vmem:[#allocation7 + $0x28] sm:$0xff]
        %v251 = vld [vmem:[#allocation7 + $0x30] sm:$0xff]
        %v252 = vld [vmem:[#allocation7 + $0x38] sm:$0xff]
        %v253 = vld [vmem:[#allocation7 + $0x40] sm:$0xff]
        %v254 = vld [vmem:[#allocation7 + $0x48] sm:$0xff]
        %v255 = vld [vmem:[#allocation7 + $0x50] sm:$0xff]
        %v256 = vld [vmem:[#allocation7 + $0x58] sm:$0xff]
        %v257 = vld [vmem:[#allocation7 + $0x60] sm:$0xff]
        %v258 = vld [vmem:[#allocation7 + $0x68] sm:$0xff]
        %v259 = vld [vmem:[#allocation7 + $0x70] sm:$0xff]
        %v260 = vld [vmem:[#allocation7 + $0x78] sm:$0xff]
        %261 = vmatprep.subr.mxu0 0.0
        %262 = vmatpush1.msra.mxu0 %v245
        %263 = vmatprep.subr.mxu0 0.0
        %264 = vmatpush1.msra.mxu0 %v246
        %265 = vmatprep.subr.mxu0 0.0
        %266 = vmatpush1.msra.mxu0 %v247
        %267 = vmatprep.subr.mxu0 0.0
        %268 = vmatpush1.msra.mxu0 %v248
        %269 = vmatprep.subr.mxu0 0.0
        %270 = vmatpush1.msra.mxu0 %v249
        %271 = vmatprep.subr.mxu0 0.0
        %272 = vmatpush1.msra.mxu0 %v250
        %273 = vmatprep.subr.mxu0 0.0
        %274 = vmatpush1.msra.mxu0 %v251
        %275 = vmatprep.subr.mxu0 0.0
        %276 = vmatpush1.msra.mxu0 %v252
        %277 = vmatprep.subr.mxu0 0.0
        %278 = vmatpush1.msra.mxu0 %v253
        %279 = vmatprep.subr.mxu0 0.0
        %280 = vmatpush1.msra.mxu0 %v254
        %281 = vmatprep.subr.mxu0 0.0
        %282 = vmatpush1.msra.mxu0 %v255
        %283 = vmatprep.subr.mxu0 0.0
        %284 = vmatpush1.msra.mxu0 %v256
        %285 = vmatprep.subr.mxu0 0.0
        %286 = vmatpush1.msra.mxu0 %v257
        %287 = vmatprep.subr.mxu0 0.0
        %288 = vmatpush1.msra.mxu0 %v258
        %289 = vmatprep.subr.mxu0 0.0
        %290 = vmatpush1.msra.mxu0 %v259
        %291 = vmatprep.subr.mxu0 0.0
        %292 = vmatpush1.msra.mxu0 %v260
        %293 = vmatprep.subr.mxu0 0.0
        %294 = vmatpush1.msra.mxu0 0.0
        %295 = vmatprep.subr.mxu0 0.0
        %296 = vmatpush1.msra.mxu0 0.0
        %297 = vmatprep.subr.mxu0 0.0
        %298 = vmatpush1.msra.mxu0 0.0
        %299 = vmatprep.subr.mxu0 0.0
        %300 = vmatpush1.msra.mxu0 0.0
        %301 = vmatprep.subr.mxu0 0.0
        %302 = vmatpush1.msra.mxu0 0.0
        %303 = vmatprep.subr.mxu0 0.0
        %304 = vmatpush1.msra.mxu0 0.0
        %305 = vmatprep.subr.mxu0 0.0
        %306 = vmatpush1.msra.mxu0 0.0
        %307 = vmatprep.subr.mxu0 0.0
        %308 = vmatpush1.msra.mxu0 0.0
        %309 = vmatprep.subr.mxu0 0.0
        %310 = vmatpush1.msra.mxu0 0.0
        %311 = vmatprep.subr.mxu0 0.0
        %312 = vmatpush1.msra.mxu0 0.0
        %313 = vmatprep.subr.mxu0 0.0
        %314 = vmatpush1.msra.mxu0 0.0
        %315 = vmatprep.subr.mxu0 0.0
        %316 = vmatpush1.msra.mxu0 0.0
        %317 = vmatprep.subr.mxu0 0.0
        %318 = vmatpush1.msra.mxu0 0.0
        %319 = vmatprep.subr.mxu0 0.0
        %320 = vmatpush1.msra.mxu0 0.0
        %321 = vmatprep.subr.mxu0 0.0
        %322 = vmatpush1.msra.mxu0 0.0
        %323 = vmatprep.subr.mxu0 0.0
        %324 = vmatpush1.msra.mxu0 0.0
        %325 = vmatprep.mubr.f32.mxu0 0.0
        %326 = vmatmul.mubr.f32.gmra.mrb[0].mxu0 %v243
        %v327 = vpop.f32.mrb[0].mxu0
        %v328 = vadd.f32 0.0, %v327
        %v329 = vpop.f32.mrb[0].mxu0
        %330 = vmatprep.mubr.f32.mxu0 0.0
        %331 = vmatmul.mubr.f32.gmra.mrb[0].mxu0 %v244
        %v332 = vpop.f32.mrb[0].mxu0
        %v333 = vadd.f32 0.0, %v332
        %v334 = vpop.f32.mrb[0].mxu0
        %335 = vdwg.mxu0
        %336 = vst [vmem:[#allocation3] sm:$0xff] %v328
        %337 = vst [vmem:[#allocation3 + $0x8] sm:$0xff] %v333
        %v338 = vld [vmem:[#allocation2 + $0x1] sm:$0xff]
        %v339 = vld [vmem:[#allocation2 + $0x9] sm:$0xff]
        %s340 = scalar_lea.vmem [#allocation7], 128
        %v341 = vld [vmem:[%s340] sm:$0xff]
        %v342 = vld [vmem:[%s340 + $0x8] sm:$0xff]
        %v343 = vld [vmem:[%s340 + $0x10] sm:$0xff]
        %v344 = vld [vmem:[%s340 + $0x18] sm:$0xff]
        %v345 = vld [vmem:[%s340 + $0x20] sm:$0xff]
        %v346 = vld [vmem:[%s340 + $0x28] sm:$0xff]
        %v347 = vld [vmem:[%s340 + $0x30] sm:$0xff]
        %v348 = vld [vmem:[%s340 + $0x38] sm:$0xff]
        %v349 = vld [vmem:[%s340 + $0x40] sm:$0xff]
        %v350 = vld [vmem:[%s340 + $0x48] sm:$0xff]
        %v351 = vld [vmem:[%s340 + $0x50] sm:$0xff]
        %v352 = vld [vmem:[%s340 + $0x58] sm:$0xff]
        %v353 = vld [vmem:[%s340 + $0x60] sm:$0xff]
        %v354 = vld [vmem:[%s340 + $0x68] sm:$0xff]
        %v355 = vld [vmem:[%s340 + $0x70] sm:$0xff]
        %v356 = vld [vmem:[%s340 + $0x78] sm:$0xff]
        %357 = vmatprep.subr.mxu0 0.0
        %358 = vmatpush1.msra.mxu0 %v341
        %359 = vmatprep.subr.mxu0 0.0
        %360 = vmatpush1.msra.mxu0 %v342
        %361 = vmatprep.subr.mxu0 0.0
        %362 = vmatpush1.msra.mxu0 %v343
        %363 = vmatprep.subr.mxu0 0.0
        %364 = vmatpush1.msra.mxu0 %v344
        %365 = vmatprep.subr.mxu0 0.0
        %366 = vmatpush1.msra.mxu0 %v345
        %367 = vmatprep.subr.mxu0 0.0
        %368 = vmatpush1.msra.mxu0 %v346
        %369 = vmatprep.subr.mxu0 0.0
        %370 = vmatpush1.msra.mxu0 %v347
        %371 = vmatprep.subr.mxu0 0.0
        %372 = vmatpush1.msra.mxu0 %v348
        %373 = vmatprep.subr.mxu0 0.0
        %374 = vmatpush1.msra.mxu0 %v349
        %375 = vmatprep.subr.mxu0 0.0
        %376 = vmatpush1.msra.mxu0 %v350
        %377 = vmatprep.subr.mxu0 0.0
        %378 = vmatpush1.msra.mxu0 %v351
        %379 = vmatprep.subr.mxu0 0.0
        %380 = vmatpush1.msra.mxu0 %v352
        %381 = vmatprep.subr.mxu0 0.0
        %382 = vmatpush1.msra.mxu0 %v353
        %383 = vmatprep.subr.mxu0 0.0
        %384 = vmatpush1.msra.mxu0 %v354
        %385 = vmatprep.subr.mxu0 0.0
        %386 = vmatpush1.msra.mxu0 %v355
        %387 = vmatprep.subr.mxu0 0.0
        %388 = vmatpush1.msra.mxu0 %v356
        %389 = vmatprep.subr.mxu0 0.0
        %390 = vmatpush1.msra.mxu0 0.0
        %391 = vmatprep.subr.mxu0 0.0
        %392 = vmatpush1.msra.mxu0 0.0
        %393 = vmatprep.subr.mxu0 0.0
        %394 = vmatpush1.msra.mxu0 0.0
        %395 = vmatprep.subr.mxu0 0.0
        %396 = vmatpush1.msra.mxu0 0.0
        %397 = vmatprep.subr.mxu0 0.0
        %398 = vmatpush1.msra.mxu0 0.0
        %399 = vmatprep.subr.mxu0 0.0
        %400 = vmatpush1.msra.mxu0 0.0
        %401 = vmatprep.subr.mxu0 0.0
        %402 = vmatpush1.msra.mxu0 0.0
        %403 = vmatprep.subr.mxu0 0.0
        %404 = vmatpush1.msra.mxu0 0.0
        %405 = vmatprep.subr.mxu0 0.0
        %406 = vmatpush1.msra.mxu0 0.0
        %407 = vmatprep.subr.mxu0 0.0
        %408 = vmatpush1.msra.mxu0 0.0
        %409 = vmatprep.subr.mxu0 0.0
        %410 = vmatpush1.msra.mxu0 0.0
        %411 = vmatprep.subr.mxu0 0.0
        %412 = vmatpush1.msra.mxu0 0.0
        %413 = vmatprep.subr.mxu0 0.0
        %414 = vmatpush1.msra.mxu0 0.0
        %415 = vmatprep.subr.mxu0 0.0
        %416 = vmatpush1.msra.mxu0 0.0
        %417 = vmatprep.subr.mxu0 0.0
        %418 = vmatpush1.msra.mxu0 0.0
        %419 = vmatprep.subr.mxu0 0.0
        %420 = vmatpush1.msra.mxu0 0.0
        %421 = vmatprep.mubr.f32.mxu0 0.0
        %422 = vmatmul.mubr.f32.gmra.mrb[0].mxu0 %v338
        %v423 = vpop.f32.mrb[0].mxu0
        %v424 = vadd.f32 0.0, %v423
        %v425 = vpop.f32.mrb[0].mxu0
        %426 = vmatprep.mubr.f32.mxu0 0.0
        %427 = vmatmul.mubr.f32.gmra.mrb[0].mxu0 %v339
        %v428 = vpop.f32.mrb[0].mxu0
        %v429 = vadd.f32 0.0, %v428
        %v430 = vpop.f32.mrb[0].mxu0
        %431 = vdwg.mxu0
        %v432 = vld [vmem:[#allocation3] sm:$0xff]
        %v433 = vld [vmem:[#allocation3 + $0x8] sm:$0xff]
        %v434 = vadd.f32 %v432, %v424
        %v435 = vadd.f32 %v433, %v429
        %436 = vst [vmem:[#allocation3] sm:$0xff] %v434
        %437 = vst [vmem:[#allocation3 + $0x8] sm:$0xff] %v435
        %v438 = vld [vmem:[#allocation2 + $0x2] sm:$0xff]
        %v439 = vld [vmem:[#allocation2 + $0xa] sm:$0xff]
        %s440 = scalar_lea.vmem [#allocation7], 256
        %v441 = vld [vmem:[%s440] sm:$0xff]
        %v442 = vld [vmem:[%s440 + $0x8] sm:$0xff]
        %v443 = vld [vmem:[%s440 + $0x10] sm:$0xff]
        %v444 = vld [vmem:[%s440 + $0x18] sm:$0xff]
        %v445 = vld [vmem:[%s440 + $0x20] sm:$0xff]
        %v446 = vld [vmem:[%s440 + $0x28] sm:$0xff]
        %v447 = vld [vmem:[%s440 + $0x30] sm:$0xff]
        %v448 = vld [vmem:[%s440 + $0x38] sm:$0xff]
        %v449 = vld [vmem:[%s440 + $0x40] sm:$0xff]
        %v450 = vld [vmem:[%s440 + $0x48] sm:$0xff]
        %v451 = vld [vmem:[%s440 + $0x50] sm:$0xff]
        %v452 = vld [vmem:[%s440 + $0x58] sm:$0xff]
        %v453 = vld [vmem:[%s440 + $0x60] sm:$0xff]
        %v454 = vld [vmem:[%s440 + $0x68] sm:$0xff]
        %v455 = vld [vmem:[%s440 + $0x70] sm:$0xff]
        %v456 = vld [vmem:[%s440 + $0x78] sm:$0xff]
        %457 = vmatprep.subr.mxu0 0.0
        %458 = vmatpush1.msra.mxu0 %v441
        %459 = vmatprep.subr.mxu0 0.0
        %460 = vmatpush1.msra.mxu0 %v442
        %461 = vmatprep.subr.mxu0 0.0
        %462 = vmatpush1.msra.mxu0 %v443
        %463 = vmatprep.subr.mxu0 0.0
        %464 = vmatpush1.msra.mxu0 %v444
        %465 = vmatprep.subr.mxu0 0.0
        %466 = vmatpush1.msra.mxu0 %v445
        %467 = vmatprep.subr.mxu0 0.0
        %468 = vmatpush1.msra.mxu0 %v446
        %469 = vmatprep.subr.mxu0 0.0
        %470 = vmatpush1.msra.mxu0 %v447
        %471 = vmatprep.subr.mxu0 0.0
        %472 = vmatpush1.msra.mxu0 %v448
        %473 = vmatprep.subr.mxu0 0.0
        %474 = vmatpush1.msra.mxu0 %v449
        %475 = vmatprep.subr.mxu0 0.0
        %476 = vmatpush1.msra.mxu0 %v450
        %477 = vmatprep.subr.mxu0 0.0
        %478 = vmatpush1.msra.mxu0 %v451
        %479 = vmatprep.subr.mxu0 0.0
        %480 = vmatpush1.msra.mxu0 %v452
        %481 = vmatprep.subr.mxu0 0.0
        %482 = vmatpush1.msra.mxu0 %v453
        %483 = vmatprep.subr.mxu0 0.0
        %484 = vmatpush1.msra.mxu0 %v454
        %485 = vmatprep.subr.mxu0 0.0
        %486 = vmatpush1.msra.mxu0 %v455
        %487 = vmatprep.subr.mxu0 0.0
        %488 = vmatpush1.msra.mxu0 %v456
        %489 = vmatprep.subr.mxu0 0.0
        %490 = vmatpush1.msra.mxu0 0.0
        %491 = vmatprep.subr.mxu0 0.0
        %492 = vmatpush1.msra.mxu0 0.0
        %493 = vmatprep.subr.mxu0 0.0
        %494 = vmatpush1.msra.mxu0 0.0
        %495 = vmatprep.subr.mxu0 0.0
        %496 = vmatpush1.msra.mxu0 0.0
        %497 = vmatprep.subr.mxu0 0.0
        %498 = vmatpush1.msra.mxu0 0.0
        %499 = vmatprep.subr.mxu0 0.0
        %500 = vmatpush1.msra.mxu0 0.0
        %501 = vmatprep.subr.mxu0 0.0
        %502 = vmatpush1.msra.mxu0 0.0
        %503 = vmatprep.subr.mxu0 0.0
        %504 = vmatpush1.msra.mxu0 0.0
        %505 = vmatprep.subr.mxu0 0.0
        %506 = vmatpush1.msra.mxu0 0.0
        %507 = vmatprep.subr.mxu0 0.0
        %508 = vmatpush1.msra.mxu0 0.0
        %509 = vmatprep.subr.mxu0 0.0
        %510 = vmatpush1.msra.mxu0 0.0
        %511 = vmatprep.subr.mxu0 0.0
        %512 = vmatpush1.msra.mxu0 0.0
        %513 = vmatprep.subr.mxu0 0.0
        %514 = vmatpush1.msra.mxu0 0.0
        %515 = vmatprep.subr.mxu0 0.0
        %516 = vmatpush1.msra.mxu0 0.0
        %517 = vmatprep.subr.mxu0 0.0
        %518 = vmatpush1.msra.mxu0 0.0
        %519 = vmatprep.subr.mxu0 0.0
        %520 = vmatpush1.msra.mxu0 0.0
        %521 = vmatprep.mubr.f32.mxu0 0.0
        %522 = vmatmul.mubr.f32.gmra.mrb[0].mxu0 %v438
        %v523 = vpop.f32.mrb[0].mxu0
        %v524 = vadd.f32 0.0, %v523
        %v525 = vpop.f32.mrb[0].mxu0
        %526 = vmatprep.mubr.f32.mxu0 0.0
        %527 = vmatmul.mubr.f32.gmra.mrb[0].mxu0 %v439
        %v528 = vpop.f32.mrb[0].mxu0
        %v529 = vadd.f32 0.0, %v528
        %v530 = vpop.f32.mrb[0].mxu0
        %531 = vdwg.mxu0
        %v532 = vld [vmem:[#allocation3] sm:$0xff]
        %v533 = vld [vmem:[#allocation3 + $0x8] sm:$0xff]
        %v534 = vadd.f32 %v532, %v524
        %v535 = vadd.f32 %v533, %v529
        %536 = vst [vmem:[#allocation3] sm:$0xff] %v534
        %537 = vst [vmem:[#allocation3 + $0x8] sm:$0xff] %v535
        %v538 = vld [vmem:[#allocation3] sm:$0xff]
        %v539 = vld [vmem:[#allocation3 + $0x8] sm:$0xff]
        %v540 = vld [vmem:[%s2] sm:$0x1]
        %v542 = vlaneseq
        %v543 = vshrl.u32 %v542, 7
        %v544 = vsub.s32 0, %v543
        %v545 = vrot.slane %v540, %v544
        %v547 = vadd.f32 %v538, %v545
        %v548 = vadd.f32 %v539, %v545
        %549 = vst [vmem:[%s217] sm:$0xff] %v547
        %550 = vst [vmem:[%s217 + $0x8] sm:$0xff] %v548
        %s551 = sand.u32 %s111, 1
        %s552 = scalar_lea.sflag [#allocation6], %s551
        %s553 = sand.u32 %s111, 1
        %s554 = smul.addr %s553, 16
        %s555 = scalar_lea.vmem [#allocation9], %s554
        // Predicated region
        $region45: #{tpu_custom_call.1} parent=31 // pred_check
          %p556 = pneg %p121
        $region46: #{tpu_custom_call.1} parent=31 // pred_check_branch
          %558 = sbr.rel (%p556) target = $region48
        $region47: #{tpu_custom_call.1} parent=31 // pred_region
          %s560 = ssub.s32 256, 256
          %561 = vsyncadd %s552, %s560
          %s562 = smul.addr %s25, 2
          %s563 = sadd.s32 %s26, %s562
          %s564 = smul.addr %s563, 128
          %s565 = scalar_lea.hbm %s3, %s564
          %s566 = sshll.u32 %s555, 4
          %s567 = int_to_ptr.vmem [resolvable:$true] %s566
          %572 = dma.vmem_to_hbm [thread:$0]  %s567, 256, %s565, %s552, 128, 128, 8
        $region48: #{tpu_custom_call.1} parent=31 // pred_fallthru
          _
      $region32: #{tpu_custom_call.1} parent=5 // pred_fallthru
        _
      %p573 = scmp.le.s32.totalorder 2, %s16
      // Predicated region
      $region49: #{tpu_custom_call.1} parent=5 // pred_check
        %p574 = pneg %p573
      $region50: #{tpu_custom_call.1} parent=5 // pred_check_branch
        %576 = sbr.rel (%p574) target = $region52
      $region51: #{tpu_custom_call.1} parent=5 // pred_region
        %s577 = ssub.s32 %s16, 2
        // Predicated region
        $region53: #{tpu_custom_call.1} parent=51 // pred_check
          %p578 = pneg %p127
        $region54: #{tpu_custom_call.1} parent=51 // pred_check_branch
          %580 = sbr.rel (%p578) target = $region56
        $region55: #{tpu_custom_call.1} parent=51 // pred_region
          %s581 = sand.u32 %s112, 1
          %s582 = scalar_lea.sflag [#allocation6], %s581
          %s583 = sand.u32 %s112, 1
          %s584 = smul.addr %s583, 16
          %s585 = scalar_lea.vmem [#allocation9], %s584
          %586 = dma.done %s582, 256
        $region56: #{tpu_custom_call.1} parent=51 // pred_fallthru
          _
      $region52: #{tpu_custom_call.1} parent=5 // pred_fallthru
        _
    $region6: #{tpu_custom_call.1} parent=1 // loop_footer
      %s20 = sadd.s32 1, %s16
    $region7: #{tpu_custom_call.1} parent=1 // loop_footer_branch
      %15 = sbr.rel target = $region3
    $region8: #{tpu_custom_call.1} parent=1 // loop_exit
      _
    %587 = vsyncpa [#allocation5], 1
    %s588 = scalar_lea.sflag [#allocation5], 1
    %589 = vsyncpa %s588, 1
    %590 = vsyncpa [#allocation8], 1
    %591 = vsyncpa [#allocation6], 1
    %s592 = scalar_lea.sflag [#allocation6], 1
    %593 = vsyncpa %s592, 1

</llo_original>
